<compile_context>
chip_gen: v5e
topology: v5e:2x2
jax: 0.10.0
libtpu: 0.0.40
codegen_flags: <defaults>
</compile_context>

<pallas_src>
import jax
import jax.numpy as jnp
import numpy as np
from jax.experimental import pallas as pl
from jax.experimental.pallas import tpu as pltpu


def _round_up(x: int, m: int) -> int:
    return ((x + m - 1) // m) * m


# ----------------------------------------------------------------------------
# Pallas kernel
# ----------------------------------------------------------------------------
def _make_kernel(N: int, H: int, W: int, HP: int, WP: int, BT: int):
    relight_norm = 1.0 / float(N * 3 * H * W)          # F.l1_loss mean
    smooth_norm = 3.0 / float(N * (H + 1) * (W + 1))    # 3 * mean(grad map)
    exp_scale = -10.0 / 9.0                              # -10 * (1/9 pool norm)
    BHP = BT * HP

    def kernel(y_ref, r_ref, i_ref, out_ref, pad_i_ref, pad_l_ref):
        r = r_ref[...].astype(jnp.float32)       # (BT, 3, H, W) reflectance
        y = y_ref[...].astype(jnp.float32)       # (BT, 3, H, W) target
        ill = i_ref[...].astype(jnp.float32)     # (BT, 1, H, W) illumination

        # ---- relight L1 (partial sum over this block of images) -------------
        l1_sum = jnp.sum(jnp.abs(r * ill - y))

        # ---- luminance of the reflectance map --------------------------------
        lum = 0.299 * r[:, 0] + 0.587 * r[:, 1] + 0.114 * r[:, 2]   # (BT,H,W)
        ill2 = ill[:, 0]                                            # (BT,H,W)

        # ---- write images + pad strips into the stacked padded planes -------
        # Image rows [b*HP, b*HP+H) x [0, W) are fully overwritten each step,
        # so only the pad strips need explicit zeroing (total stores == one
        # full plane, no redundant zero pass).
        zcol = jnp.zeros((BHP, WP - W), jnp.float32)
        pad_i_ref[:, W:] = zcol
        pad_l_ref[:, W:] = zcol
        zrow = jnp.zeros((HP - H, W), jnp.float32)
        for b in range(BT):                      # static unroll, BT is small
            r0 = b * HP
            pad_i_ref[r0 + H:r0 + HP, :W] = zrow
            pad_l_ref[r0 + H:r0 + HP, :W] = zrow
            pad_i_ref[r0:r0 + H, :W] = ill2[b]
            pad_l_ref[r0:r0 + H, :W] = lum[b]
        p_i = pad_i_ref[...]
        p_l = pad_l_ref[...]

        up = 1           # roll by +1  -> value at [idx-1]
        dn_r = BHP - 1   # roll by -1 along sublanes -> value at [idx+1]
        dn_c = WP - 1    # roll by -1 along lanes    -> value at [idx+1]

        def box3(g):     # raw 3x3 box sum (zero pad supplied by the wrap)
            s = g + pltpu.roll(g, up, 0) + pltpu.roll(g, dn_r, 0)
            return s + pltpu.roll(s, up, 1) + pltpu.roll(s, dn_c, 1)

        # ---- x-direction smoothness pass -------------------------------------
        gx_i = jnp.abs(p_i - pltpu.roll(p_i, up, 1))
        gx_r = jnp.abs(p_l - pltpu.roll(p_l, up, 1))
        sm_x = jnp.sum(gx_i * jnp.exp(box3(gx_r) * exp_scale))

        # ---- y-direction smoothness pass (after the x reduction) -------------
        gy_i = jnp.abs(p_i - pltpu.roll(p_i, up, 0))
        gy_r = jnp.abs(p_l - pltpu.roll(p_l, up, 0))
        sm_y = jnp.sum(gy_i * jnp.exp(box3(gy_r) * exp_scale))

        out_ref[0, 0] = l1_sum * relight_norm + (sm_x + sm_y) * smooth_norm

    return kernel


# ----------------------------------------------------------------------------
# Wrapper
# ----------------------------------------------------------------------------
def enhance_loss_pallas(y, r_low, i_delta):
    N, C, H, W = y.shape
    assert C == 3 and i_delta.shape == (N, 1, H, W)

    HP = _round_up(H + 2, 8)       # >= H+2, sublane aligned
    WP = _round_up(W + 2, 128)     # >= W+2, lane aligned

    # Generation-aware VMEM budget (v5e/v6e: 128 MiB, v7x: 64 MiB per core).
    try:
        vmem_cap = int(pltpu.get_tpu_info().vmem_capacity_bytes)
    except Exception:
        vmem_cap = 64 << 20        # conservative fallback (v7x per-core size)
    budget = int(vmem_cap * 0.70)

    def vmem_need(bt):
        # double-buffered input blocks + 2 scratch planes + ~8 live plane temps
        return 2 * 7 * bt * H * W * 4 + 10 * bt * HP * WP * 4

    # Pack several small images per grid step along the sublane axis.
    bt = 1
    if HP * WP * 4 <= (2 << 20):                 # only worth it for small planes
        for cand in range(min(N, 16), 0, -1):
            if N % cand == 0 and vmem_need(cand) + (4 << 20) <= budget:
                bt = cand
                break

    vmem_limit = int(min(max(vmem_need(bt) + (4 << 20), 32 << 20), budget))
    vmem_limit = max(vmem_limit, 16 << 20)

    num_blocks = N // bt
    out = pl.pallas_call(
        _make_kernel(N, H, W, HP, WP, bt),
        out_shape=jax.ShapeDtypeStruct((num_blocks, 1), jnp.float32),
        grid_spec=pltpu.PrefetchScalarGridSpec(
            num_scalar_prefetch=0,
            grid=(num_blocks,),
            in_specs=[
                pl.BlockSpec((bt, C, H, W), lambda g: (g, 0, 0, 0)),   # y
                pl.BlockSpec((bt, C, H, W), lambda g: (g, 0, 0, 0)),   # r_low
                pl.BlockSpec((bt, 1, H, W), lambda g: (g, 0, 0, 0)),   # i_delta
            ],
            out_specs=pl.BlockSpec((1, 1), lambda g: (g, 0),
                                   memory_space=pltpu.MemorySpace.SMEM),
            scratch_shapes=[
                pltpu.VMEM((bt * HP, WP), jnp.float32),   # padded illumination
                pltpu.VMEM((bt * HP, WP), jnp.float32),   # padded luminance
            ],
        ),
        compiler_params=pltpu.CompilerParams(
            dimension_semantics=("parallel",),
            vmem_limit_bytes=vmem_limit,
        ),
    )(y, r_low, i_delta)
    return jnp.sum(out)


# ----------------------------------------------------------------------------
# Pure-JAX reference mirroring the PyTorch module (validation only).
# ----------------------------------------------------------------------------
def enhance_loss_ref(y, r_low, i_delta):
    kx = jnp.array([[0.0, 0.0], [-1.0, 1.0]], jnp.float32).reshape(1, 1, 2, 2)
    ky = jnp.transpose(kx, (0, 1, 3, 2))

    def grad(x, k):
        return jnp.abs(jax.lax.conv_general_dilated(
            x, k, window_strides=(1, 1), padding=((1, 1), (1, 1)),
            dimension_numbers=("NCHW", "OIHW", "NCHW")))

    def avg_grad(x, k):
        g = grad(x, k)
        s = jax.lax.reduce_window(g, 0.0, jax.lax.add, (1, 1, 3, 3),
                                  (1, 1, 1, 1),
                                  padding=((0, 0), (0, 0), (1, 1), (1, 1)))
        return s / 9.0

    i_delta_3 = jnp.concatenate([i_delta, i_delta, i_delta], axis=1)
    y_hat = r_low * i_delta_3
    relight = jnp.mean(jnp.abs(y_hat - y))
    lum = (0.299 * r_low[:, 0:1] + 0.587 * r_low[:, 1:2]
           + 0.114 * r_low[:, 2:3])
    gmap = (grad(i_delta, kx) * jnp.exp(-10.0 * avg_grad(lum, kx))
            + grad(i_delta, ky) * jnp.exp(-10.0 * avg_grad(lum, ky)))
    return relight + 3.0 * jnp.mean(gmap)


if __name__ == "__main__":
    key = jax.random.PRNGKey(0)
    k1, k2, k3 = jax.random.split(key, 3)
    N, C, H, W = 2, 3, 16, 16
    y = jax.random.uniform(k1, (N, C, H, W), dtype=jnp.float32)
    r_low = jax.random.uniform(k2, (N, C, H, W), dtype=jnp.float32)
    i_delta = jax.random.uniform(k3, (N, 1, H, W), dtype=jnp.float32)

    loss = jax.block_until_ready(enhance_loss_pallas(y, r_low, i_delta))
    ref = jax.block_until_ready(enhance_loss_ref(y, r_low, i_delta))

    np.testing.assert_allclose(np.asarray(loss), np.asarray(ref),
                               rtol=2e-3, atol=2e-4)
    print("KERNEL_OK")
</pallas_src>

<mosaic_0001>
module attributes {stable_mosaic.version = 11 : i64} {
  func.func @kernel(%arg0: i32, %arg1: memref<2x3x16x16xf32, #tpu.memory_space<vmem>>, %arg2: memref<2x3x16x16xf32, #tpu.memory_space<vmem>>, %arg3: memref<2x1x16x16xf32, #tpu.memory_space<vmem>>, %arg4: memref<1x1xf32, #tpu.memory_space<smem>>, %arg5: memref<48x128xf32, #tpu.memory_space<vmem>>, %arg6: memref<48x128xf32, #tpu.memory_space<vmem>>) attributes {dimension_semantics = [#tpu.dimension_semantics<parallel>], iteration_bounds = array<i64: 1>, scalar_prefetch = 0 : i64, scratch_operands = 2 : i64, tpu.core_type = #tpu.core_type<tc>, window_params = [{transform_indices = @transform_0, window_bounds = array<i64: 2, 3, 16, 16>}, {transform_indices = @transform_1, window_bounds = array<i64: 2, 3, 16, 16>}, {transform_indices = @transform_2, window_bounds = array<i64: 2, 1, 16, 16>}, {transform_indices = @transform_3, window_bounds = array<i64: 1, 1>}]} {
    %c0 = arith.constant 0 : index
    %c0_0 = arith.constant 0 : index
    %c0_1 = arith.constant 0 : index
    %c0_2 = arith.constant 0 : index
    %0 = vector.load %arg2[%c0, %c0_0, %c0_1, %c0_2] : memref<2x3x16x16xf32, #tpu.memory_space<vmem>>, vector<2x3x16x16xf32>
    %c0_3 = arith.constant 0 : index
    %c0_4 = arith.constant 0 : index
    %c0_5 = arith.constant 0 : index
    %c0_6 = arith.constant 0 : index
    %1 = vector.load %arg1[%c0_3, %c0_4, %c0_5, %c0_6] : memref<2x3x16x16xf32, #tpu.memory_space<vmem>>, vector<2x3x16x16xf32>
    %c0_7 = arith.constant 0 : index
    %c0_8 = arith.constant 0 : index
    %c0_9 = arith.constant 0 : index
    %c0_10 = arith.constant 0 : index
    %2 = vector.load %arg3[%c0_7, %c0_8, %c0_9, %c0_10] : memref<2x1x16x16xf32, #tpu.memory_space<vmem>>, vector<2x1x16x16xf32>
    %3 = vector.broadcast %2 : vector<2x1x16x16xf32> to vector<2x3x16x16xf32>
    %4 = arith.mulf %0, %3 : vector<2x3x16x16xf32>
    %5 = arith.subf %4, %1 : vector<2x3x16x16xf32>
    %6 = math.absf %5 : vector<2x3x16x16xf32>
    %7 = vector.shape_cast %6 : vector<2x3x16x16xf32> to vector<1x2x3x16x16xf32>
    %cst = arith.constant dense<0.000000e+00> : vector<1xf32>
    %8 = vector.multi_reduction <add>, %7, %cst [1, 2, 3, 4] : vector<1x2x3x16x16xf32> to vector<1xf32>
    %9 = vector.shape_cast %8 : vector<1xf32> to vector<1x1x1x1x1xf32>
    %10 = vector.extract %9[0, 0, 0, 0, 0] : f32 from vector<1x1x1x1x1xf32>
    %11 = vector.extract_strided_slice %0 {offsets = [0, 0, 0, 0], sizes = [2, 1, 16, 16], strides = [1, 1, 1, 1]} : vector<2x3x16x16xf32> to vector<2x1x16x16xf32>
    %12 = vector.shape_cast %11 : vector<2x1x16x16xf32> to vector<2x16x16xf32>
    %cst_11 = arith.constant 2.990000e-01 : f32
    %13 = vector.broadcast %cst_11 : f32 to vector<2x16x16xf32>
    %14 = arith.mulf %13, %12 : vector<2x16x16xf32>
    %15 = vector.extract_strided_slice %0 {offsets = [0, 1, 0, 0], sizes = [2, 1, 16, 16], strides = [1, 1, 1, 1]} : vector<2x3x16x16xf32> to vector<2x1x16x16xf32>
    %16 = vector.shape_cast %15 : vector<2x1x16x16xf32> to vector<2x16x16xf32>
    %cst_12 = arith.constant 5.870000e-01 : f32
    %17 = vector.broadcast %cst_12 : f32 to vector<2x16x16xf32>
    %18 = arith.mulf %17, %16 : vector<2x16x16xf32>
    %19 = arith.addf %14, %18 : vector<2x16x16xf32>
    %20 = vector.extract_strided_slice %0 {offsets = [0, 2, 0, 0], sizes = [2, 1, 16, 16], strides = [1, 1, 1, 1]} : vector<2x3x16x16xf32> to vector<2x1x16x16xf32>
    %21 = vector.shape_cast %20 : vector<2x1x16x16xf32> to vector<2x16x16xf32>
    %cst_13 = arith.constant 1.140000e-01 : f32
    %22 = vector.broadcast %cst_13 : f32 to vector<2x16x16xf32>
    %23 = arith.mulf %22, %21 : vector<2x16x16xf32>
    %24 = arith.addf %19, %23 : vector<2x16x16xf32>
    %25 = vector.shape_cast %2 : vector<2x1x16x16xf32> to vector<2x16x16xf32>
    %cst_14 = arith.constant 0.000000e+00 : f32
    %26 = vector.broadcast %cst_14 : f32 to vector<48x112xf32>
    %c0_15 = arith.constant 0 : index
    %c16 = arith.constant 16 : index
    %27 = vector.load %arg5[%c0_15, %c16] : memref<48x128xf32, #tpu.memory_space<vmem>>, vector<48x112xf32>
    tpu.vector_store %arg5[%c0_15, %c16], %26 {strides = array<i32>} : memref<48x128xf32, #tpu.memory_space<vmem>>, vector<48x112xf32>,
    %c0_16 = arith.constant 0 : index
    %c16_17 = arith.constant 16 : index
    %28 = vector.load %arg6[%c0_16, %c16_17] : memref<48x128xf32, #tpu.memory_space<vmem>>, vector<48x112xf32>
    tpu.vector_store %arg6[%c0_16, %c16_17], %26 {strides = array<i32>} : memref<48x128xf32, #tpu.memory_space<vmem>>, vector<48x112xf32>,
    %cst_18 = arith.constant 0.000000e+00 : f32
    %29 = vector.broadcast %cst_18 : f32 to vector<8x16xf32>
    %c16_19 = arith.constant 16 : index
    %c0_20 = arith.constant 0 : index
    %30 = vector.load %arg5[%c16_19, %c0_20] : memref<48x128xf32, #tpu.memory_space<vmem>>, vector<8x16xf32>
    tpu.vector_store %arg5[%c16_19, %c0_20], %29 {strides = array<i32>} : memref<48x128xf32, #tpu.memory_space<vmem>>, vector<8x16xf32>,
    %c16_21 = arith.constant 16 : index
    %c0_22 = arith.constant 0 : index
    %31 = vector.load %arg6[%c16_21, %c0_22] : memref<48x128xf32, #tpu.memory_space<vmem>>, vector<8x16xf32>
    tpu.vector_store %arg6[%c16_21, %c0_22], %29 {strides = array<i32>} : memref<48x128xf32, #tpu.memory_space<vmem>>, vector<8x16xf32>,
    %32 = vector.extract_strided_slice %25 {offsets = [0, 0, 0], sizes = [1, 16, 16], strides = [1, 1, 1]} : vector<2x16x16xf32> to vector<1x16x16xf32>
    %33 = vector.shape_cast %32 : vector<1x16x16xf32> to vector<16x16xf32>
    %c0_23 = arith.constant 0 : index
    %c0_24 = arith.constant 0 : index
    %34 = vector.load %arg5[%c0_23, %c0_24] : memref<48x128xf32, #tpu.memory_space<vmem>>, vector<16x16xf32>
    tpu.vector_store %arg5[%c0_23, %c0_24], %33 {strides = array<i32>} : memref<48x128xf32, #tpu.memory_space<vmem>>, vector<16x16xf32>,
    %35 = vector.extract_strided_slice %24 {offsets = [0, 0, 0], sizes = [1, 16, 16], strides = [1, 1, 1]} : vector<2x16x16xf32> to vector<1x16x16xf32>
    %36 = vector.shape_cast %35 : vector<1x16x16xf32> to vector<16x16xf32>
    %c0_25 = arith.constant 0 : index
    %c0_26 = arith.constant 0 : index
    %37 = vector.load %arg6[%c0_25, %c0_26] : memref<48x128xf32, #tpu.memory_space<vmem>>, vector<16x16xf32>
    tpu.vector_store %arg6[%c0_25, %c0_26], %36 {strides = array<i32>} : memref<48x128xf32, #tpu.memory_space<vmem>>, vector<16x16xf32>,
    %c40 = arith.constant 40 : index
    %c0_27 = arith.constant 0 : index
    %38 = vector.load %arg5[%c40, %c0_27] : memref<48x128xf32, #tpu.memory_space<vmem>>, vector<8x16xf32>
    tpu.vector_store %arg5[%c40, %c0_27], %29 {strides = array<i32>} : memref<48x128xf32, #tpu.memory_space<vmem>>, vector<8x16xf32>,
    %c40_28 = arith.constant 40 : index
    %c0_29 = arith.constant 0 : index
    %39 = vector.load %arg6[%c40_28, %c0_29] : memref<48x128xf32, #tpu.memory_space<vmem>>, vector<8x16xf32>
    tpu.vector_store %arg6[%c40_28, %c0_29], %29 {strides = array<i32>} : memref<48x128xf32, #tpu.memory_space<vmem>>, vector<8x16xf32>,
    %40 = vector.extract_strided_slice %25 {offsets = [1, 0, 0], sizes = [1, 16, 16], strides = [1, 1, 1]} : vector<2x16x16xf32> to vector<1x16x16xf32>
    %41 = vector.shape_cast %40 : vector<1x16x16xf32> to vector<16x16xf32>
    %c24 = arith.constant 24 : index
    %c0_30 = arith.constant 0 : index
    %42 = vector.load %arg5[%c24, %c0_30] : memref<48x128xf32, #tpu.memory_space<vmem>>, vector<16x16xf32>
    tpu.vector_store %arg5[%c24, %c0_30], %41 {strides = array<i32>} : memref<48x128xf32, #tpu.memory_space<vmem>>, vector<16x16xf32>,
    %43 = vector.extract_strided_slice %24 {offsets = [1, 0, 0], sizes = [1, 16, 16], strides = [1, 1, 1]} : vector<2x16x16xf32> to vector<1x16x16xf32>
    %44 = vector.shape_cast %43 : vector<1x16x16xf32> to vector<16x16xf32>
    %c24_31 = arith.constant 24 : index
    %c0_32 = arith.constant 0 : index
    %45 = vector.load %arg6[%c24_31, %c0_32] : memref<48x128xf32, #tpu.memory_space<vmem>>, vector<16x16xf32>
    tpu.vector_store %arg6[%c24_31, %c0_32], %44 {strides = array<i32>} : memref<48x128xf32, #tpu.memory_space<vmem>>, vector<16x16xf32>,
    %c0_33 = arith.constant 0 : index
    %c0_34 = arith.constant 0 : index
    %46 = vector.load %arg5[%c0_33, %c0_34] : memref<48x128xf32, #tpu.memory_space<vmem>>, vector<48x128xf32>
    %c0_35 = arith.constant 0 : index
    %c0_36 = arith.constant 0 : index
    %47 = vector.load %arg6[%c0_35, %c0_36] : memref<48x128xf32, #tpu.memory_space<vmem>>, vector<48x128xf32>
    %c1_i32 = arith.constant 1 : i32
    %48 = tpu.dynamic_rotate %46 by %c1_i32 dim 1 : vector<48x128xf32>, i32 -> vector<48x128xf32>
    %49 = arith.subf %46, %48 : vector<48x128xf32>
    %50 = math.absf %49 : vector<48x128xf32>
    %c1_i32_37 = arith.constant 1 : i32
    %51 = tpu.dynamic_rotate %47 by %c1_i32_37 dim 1 : vector<48x128xf32>, i32 -> vector<48x128xf32>
    %52 = arith.subf %47, %51 : vector<48x128xf32>
    %53 = math.absf %52 : vector<48x128xf32>
    %c1_i32_38 = arith.constant 1 : i32
    %54 = tpu.dynamic_rotate %53 by %c1_i32_38 dim 0 : vector<48x128xf32>, i32 -> vector<48x128xf32>
    %55 = arith.addf %53, %54 : vector<48x128xf32>
    %c47_i32 = arith.constant 47 : i32
    %56 = tpu.dynamic_rotate %53 by %c47_i32 dim 0 : vector<48x128xf32>, i32 -> vector<48x128xf32>
    %57 = arith.addf %55, %56 : vector<48x128xf32>
    %c1_i32_39 = arith.constant 1 : i32
    %58 = tpu.dynamic_rotate %57 by %c1_i32_39 dim 1 : vector<48x128xf32>, i32 -> vector<48x128xf32>
    %59 = arith.addf %57, %58 : vector<48x128xf32>
    %c127_i32 = arith.constant 127 : i32
    %60 = tpu.dynamic_rotate %57 by %c127_i32 dim 1 : vector<48x128xf32>, i32 -> vector<48x128xf32>
    %61 = arith.addf %59, %60 : vector<48x128xf32>
    %cst_40 = arith.constant -1.11111116 : f32
    %62 = vector.broadcast %cst_40 : f32 to vector<48x128xf32>
    %63 = arith.mulf %61, %62 : vector<48x128xf32>
    %64 = math.exp %63 : vector<48x128xf32>
    %65 = arith.mulf %50, %64 : vector<48x128xf32>
    %66 = vector.shape_cast %65 : vector<48x128xf32> to vector<1x48x128xf32>
    %cst_41 = arith.constant dense<0.000000e+00> : vector<1xf32>
    %67 = vector.multi_reduction <add>, %66, %cst_41 [1, 2] : vector<1x48x128xf32> to vector<1xf32>
    %68 = vector.shape_cast %67 : vector<1xf32> to vector<1x1x1xf32>
    %69 = vector.extract %68[0, 0, 0] : f32 from vector<1x1x1xf32>
    %c1_i32_42 = arith.constant 1 : i32
    %70 = tpu.dynamic_rotate %46 by %c1_i32_42 dim 0 : vector<48x128xf32>, i32 -> vector<48x128xf32>
    %71 = arith.subf %46, %70 : vector<48x128xf32>
    %72 = math.absf %71 : vector<48x128xf32>
    %c1_i32_43 = arith.constant 1 : i32
    %73 = tpu.dynamic_rotate %47 by %c1_i32_43 dim 0 : vector<48x128xf32>, i32 -> vector<48x128xf32>
    %74 = arith.subf %47, %73 : vector<48x128xf32>
    %75 = math.absf %74 : vector<48x128xf32>
    %c1_i32_44 = arith.constant 1 : i32
    %76 = tpu.dynamic_rotate %75 by %c1_i32_44 dim 0 : vector<48x128xf32>, i32 -> vector<48x128xf32>
    %77 = arith.addf %75, %76 : vector<48x128xf32>
    %c47_i32_45 = arith.constant 47 : i32
    %78 = tpu.dynamic_rotate %75 by %c47_i32_45 dim 0 : vector<48x128xf32>, i32 -> vector<48x128xf32>
    %79 = arith.addf %77, %78 : vector<48x128xf32>
    %c1_i32_46 = arith.constant 1 : i32
    %80 = tpu.dynamic_rotate %79 by %c1_i32_46 dim 1 : vector<48x128xf32>, i32 -> vector<48x128xf32>
    %81 = arith.addf %79, %80 : vector<48x128xf32>
    %c127_i32_47 = arith.constant 127 : i32
    %82 = tpu.dynamic_rotate %79 by %c127_i32_47 dim 1 : vector<48x128xf32>, i32 -> vector<48x128xf32>
    %83 = arith.addf %81, %82 : vector<48x128xf32>
    %cst_48 = arith.constant -1.11111116 : f32
    %84 = vector.broadcast %cst_48 : f32 to vector<48x128xf32>
    %85 = arith.mulf %83, %84 : vector<48x128xf32>
    %86 = math.exp %85 : vector<48x128xf32>
    %87 = arith.mulf %72, %86 : vector<48x128xf32>
    %88 = vector.shape_cast %87 : vector<48x128xf32> to vector<1x48x128xf32>
    %cst_49 = arith.constant dense<0.000000e+00> : vector<1xf32>
    %89 = vector.multi_reduction <add>, %88, %cst_49 [1, 2] : vector<1x48x128xf32> to vector<1xf32>
    %90 = vector.shape_cast %89 : vector<1xf32> to vector<1x1x1xf32>
    %91 = vector.extract %90[0, 0, 0] : f32 from vector<1x1x1xf32>
    %cst_50 = arith.constant 6.51041686E-4 : f32
    %92 = arith.mulf %10, %cst_50 : f32
    %93 = arith.addf %69, %91 : f32
    %cst_51 = arith.constant 0.00519031147 : f32
    %94 = arith.mulf %93, %cst_51 : f32
    %95 = arith.addf %92, %94 : f32
    %c0_52 = arith.constant 0 : index
    %c0_53 = arith.constant 0 : index
    %96 = memref.load %arg4[%c0_52, %c0_53] : memref<1x1xf32, #tpu.memory_space<smem>>
    memref.store %95, %arg4[%c0_52, %c0_53] : memref<1x1xf32, #tpu.memory_space<smem>>
    return
  }
  func.func @transform_0(%arg0: i32) -> (i32, i32, i32, i32) {
    %c0_i32 = arith.constant 0 : i32
    %c0_i32_0 = arith.constant 0 : i32
    %c0_i32_1 = arith.constant 0 : i32
    %c0_i32_2 = arith.constant 0 : i32
    return %arg0, %c0_i32, %c0_i32_0, %c0_i32_1 : i32, i32, i32, i32
  }
  func.func @transform_1(%arg0: i32) -> (i32, i32, i32, i32) {
    %c0_i32 = arith.constant 0 : i32
    %c0_i32_0 = arith.constant 0 : i32
    %c0_i32_1 = arith.constant 0 : i32
    %c0_i32_2 = arith.constant 0 : i32
    return %arg0, %c0_i32, %c0_i32_0, %c0_i32_1 : i32, i32, i32, i32
  }
  func.func @transform_2(%arg0: i32) -> (i32, i32, i32, i32) {
    %c0_i32 = arith.constant 0 : i32
    %c0_i32_0 = arith.constant 0 : i32
    %c0_i32_1 = arith.constant 0 : i32
    %c0_i32_2 = arith.constant 0 : i32
    return %arg0, %c0_i32, %c0_i32_0, %c0_i32_1 : i32, i32, i32, i32
  }
  func.func @transform_3(%arg0: i32) -> (i32, i32) {
    %c0_i32 = arith.constant 0 : i32
    %c0_i32_0 = arith.constant 0 : i32
    return %arg0, %c0_i32 : i32, i32
  }
}

</mosaic_0001>

<llo_original>
// kernel: tpu_custom_call.1
$region0: #{tpu_custom_call.1}
  #allocation0 [shape = 'u32[]', space=smem, size = 0x4, offset = 0x4, fixed_abs, tag = 'smem constant byte address 0x4 - core index']
  #allocation1 [shape = 'u32[72,128]{1,0:T(1,128)}', space=vmem, size = 0x9000, scoped, tag = 'internal scratch']
  #allocation2 [shape = 'f32[48,128]{1,0:T(8,128)}', space=vmem, size = 0x6000, scoped, tag = 'scratch operand']
  #allocation3 [shape = 'f32[48,128]{1,0:T(8,128)}', space=vmem, size = 0x6000, scoped, tag = 'scratch operand']
  %s0 = inlined_call_operand.hbm [shape: f32[2,3,16,16], index: 0, kind: input, shape index: {}]
  %s1 = inlined_call_operand.hbm [shape: f32[2,3,16,16], index: 1, kind: input, shape index: {}]
  %s2 = inlined_call_operand.hbm [shape: f32[2,1,16,16], index: 2, kind: input, shape index: {}]
  %s3 = inlined_call_operand.hbm [shape: f32[1,1], index: 3, kind: output, shape index: {}]
  %s4 = sld [smem:[#allocation0]]
  $region34: #{tpu_custom_call.1} parent=0
    _
  %s6 = ssub.s32 1, %s4
  %s7 = scalar_select 0, %s6, %s4
  $region1: #{tpu_custom_call.1} parent=0
    #allocation4 [shape = 'u8[49152]{0}', space=vmem, size = 0xc000, scoped, tag = 'input window, operand 0, single buffered']
    #allocation5 [shape = 's32[1]{0}', space=sflag, size = 0x4, scoped, tag = 'scoped memory for tpu_custom_call.1']
    #allocation6 [shape = 's32[1]{0}', space=sflag, size = 0x4, scoped, tag = 'scoped memory for tpu_custom_call.1']
    #allocation7 [shape = 'u8[49152]{0}', space=vmem, size = 0xc000, scoped, tag = 'input window, operand 1, single buffered']
    #allocation8 [shape = 's32[1]{0}', space=sflag, size = 0x4, scoped, tag = 'scoped memory for tpu_custom_call.1']
    #allocation9 [shape = 'u8[16384]{0}', space=vmem, size = 0x4000, scoped, tag = 'input window, operand 2, single buffered']
    #allocation10 [shape = 'u8[512]{0}', space=smem, size = 0x200, scoped, tag = 'output window, operand 0, single buffered']
    %8 = vsyncpa [#allocation5], 0
    %9 = vsyncpa [#allocation8], 0
    %10 = vsyncpa [#allocation6], 0
    // Predicated region
    $region2: #{tpu_custom_call.1} parent=1 // pred_check
      _
    $region3: #{tpu_custom_call.1} parent=1 // pred_check_branch
      %12 = sbr.rel (0) target = $region5
    $region4: #{tpu_custom_call.1} parent=1 // pred_region
      %14 = vsyncadd [#allocation5], 0
      %s15 = sshll.u32 %s0, 4
      %s16 = int_to_ptr.hbm [resolvable:$true] %s15
      %s17 = sshll.u32 [#allocation4], 4
      %s18 = int_to_ptr.vmem [resolvable:$true] %s17
      %23 = dma.hbm_to_vmem [thread:$0]  %s16, 1536, %s18, [#allocation5], 128, 128, 8
    $region5: #{tpu_custom_call.1} parent=1 // pred_fallthru
      _
    // Predicated region
    $region6: #{tpu_custom_call.1} parent=1 // pred_check
      _
    $region7: #{tpu_custom_call.1} parent=1 // pred_check_branch
      %25 = sbr.rel (0) target = $region9
    $region8: #{tpu_custom_call.1} parent=1 // pred_region
      %27 = vsyncadd [#allocation8], 0
      %s28 = sshll.u32 %s1, 4
      %s29 = int_to_ptr.hbm [resolvable:$true] %s28
      %s30 = sshll.u32 [#allocation7], 4
      %s31 = int_to_ptr.vmem [resolvable:$true] %s30
      %36 = dma.hbm_to_vmem [thread:$0]  %s29, 1536, %s31, [#allocation8], 128, 128, 8
    $region9: #{tpu_custom_call.1} parent=1 // pred_fallthru
      _
    // Predicated region
    $region10: #{tpu_custom_call.1} parent=1 // pred_check
      _
    $region11: #{tpu_custom_call.1} parent=1 // pred_check_branch
      %38 = sbr.rel (0) target = $region13
    $region12: #{tpu_custom_call.1} parent=1 // pred_region
      %40 = vsyncadd [#allocation8], 0
      %s41 = sshll.u32 %s2, 4
      %s42 = int_to_ptr.hbm [resolvable:$true] %s41
      %s43 = sshll.u32 [#allocation9], 4
      %s44 = int_to_ptr.vmem [resolvable:$true] %s43
      %49 = dma.hbm_to_vmem [thread:$0]  %s42, 512, %s44, [#allocation8], 128, 128, 8
    $region13: #{tpu_custom_call.1} parent=1 // pred_fallthru
      _
    // Predicated region
    $region14: #{tpu_custom_call.1} parent=1 // pred_check
      _
    $region15: #{tpu_custom_call.1} parent=1 // pred_check_branch
      %51 = sbr.rel (0) target = $region17
    $region16: #{tpu_custom_call.1} parent=1 // pred_region
      %53 = dma.done [#allocation5], 1536
    $region17: #{tpu_custom_call.1} parent=1 // pred_fallthru
      _
    // Predicated region
    $region18: #{tpu_custom_call.1} parent=1 // pred_check
      _
    $region19: #{tpu_custom_call.1} parent=1 // pred_check_branch
      %55 = sbr.rel (0) target = $region21
    $region20: #{tpu_custom_call.1} parent=1 // pred_region
      %57 = dma.done [#allocation8], 1536
    $region21: #{tpu_custom_call.1} parent=1 // pred_fallthru
      _
    // Predicated region
    $region22: #{tpu_custom_call.1} parent=1 // pred_check
      _
    $region23: #{tpu_custom_call.1} parent=1 // pred_check_branch
      %59 = sbr.rel (0) target = $region25
    $region24: #{tpu_custom_call.1} parent=1 // pred_region
      %61 = dma.done [#allocation8], 512
    $region25: #{tpu_custom_call.1} parent=1 // pred_fallthru
      _
    %v62 = vld [vmem:[#allocation7] sm:$0xff]
    %v63 = vld [vmem:[#allocation7 + $0x8] sm:$0xff]
    %v64 = vld [vmem:[#allocation7 + $0x10] sm:$0xff]
    %v65 = vld [vmem:[#allocation7 + $0x18] sm:$0xff]
    %v66 = vld [vmem:[#allocation7 + $0x20] sm:$0xff]
    %v67 = vld [vmem:[#allocation7 + $0x28] sm:$0xff]
    %v68 = vld [vmem:[#allocation7 + $0x30] sm:$0xff]
    %v69 = vld [vmem:[#allocation7 + $0x38] sm:$0xff]
    %v70 = vld [vmem:[#allocation7 + $0x40] sm:$0xff]
    %v71 = vld [vmem:[#allocation7 + $0x48] sm:$0xff]
    %v72 = vld [vmem:[#allocation7 + $0x50] sm:$0xff]
    %v73 = vld [vmem:[#allocation7 + $0x58] sm:$0xff]
    %v74 = vld [vmem:[#allocation4] sm:$0xff]
    %v75 = vld [vmem:[#allocation4 + $0x8] sm:$0xff]
    %v76 = vld [vmem:[#allocation4 + $0x10] sm:$0xff]
    %v77 = vld [vmem:[#allocation4 + $0x18] sm:$0xff]
    %v78 = vld [vmem:[#allocation4 + $0x20] sm:$0xff]
    %v79 = vld [vmem:[#allocation4 + $0x28] sm:$0xff]
    %v80 = vld [vmem:[#allocation4 + $0x30] sm:$0xff]
    %v81 = vld [vmem:[#allocation4 + $0x38] sm:$0xff]
    %v82 = vld [vmem:[#allocation4 + $0x40] sm:$0xff]
    %v83 = vld [vmem:[#allocation4 + $0x48] sm:$0xff]
    %v84 = vld [vmem:[#allocation4 + $0x50] sm:$0xff]
    %v85 = vld [vmem:[#allocation4 + $0x58] sm:$0xff]
    %v86 = vld [vmem:[#allocation9] sm:$0xff]
    %v87 = vld [vmem:[#allocation9 + $0x8] sm:$0xff]
    %v88 = vld [vmem:[#allocation9 + $0x10] sm:$0xff]
    %v89 = vld [vmem:[#allocation9 + $0x18] sm:$0xff]
    %v90 = vmul.f32 %v62, %v86
    %v91 = vmul.f32 %v63, %v87
    %v92 = vmul.f32 %v64, %v86
    %v93 = vmul.f32 %v65, %v87
    %v94 = vmul.f32 %v66, %v86
    %v95 = vmul.f32 %v67, %v87
    %v96 = vmul.f32 %v68, %v88
    %v97 = vmul.f32 %v69, %v89
    %v98 = vmul.f32 %v70, %v88
    %v99 = vmul.f32 %v71, %v89
    %v100 = vmul.f32 %v72, %v88
    %v101 = vmul.f32 %v73, %v89
    %v102 = vsub.f32 %v90, %v74
    %v103 = vsub.f32 %v91, %v75
    %v104 = vsub.f32 %v92, %v76
    %v105 = vsub.f32 %v93, %v77
    %v106 = vsub.f32 %v94, %v78
    %v107 = vsub.f32 %v95, %v79
    %v108 = vsub.f32 %v96, %v80
    %v109 = vsub.f32 %v97, %v81
    %v110 = vsub.f32 %v98, %v82
    %v111 = vsub.f32 %v99, %v83
    %v112 = vsub.f32 %v100, %v84
    %v113 = vsub.f32 %v101, %v85
    %v114 = vand.u32 2147483647, %v102
    %v115 = vand.u32 2147483647, %v103
    %v116 = vand.u32 2147483647, %v104
    %v117 = vand.u32 2147483647, %v105
    %v118 = vand.u32 2147483647, %v106
    %v119 = vand.u32 2147483647, %v107
    %v120 = vand.u32 2147483647, %v108
    %v121 = vand.u32 2147483647, %v109
    %v122 = vand.u32 2147483647, %v110
    %v123 = vand.u32 2147483647, %v111
    %v124 = vand.u32 2147483647, %v112
    %v125 = vand.u32 2147483647, %v113
    %vm126 = vcmask 130048
    %v127 = vsel %vm126, %v114, 0.0
    %v128 = vsel %vm126, %v115, 0.0
    %v129 = vadd.f32 %v127, %v128
    %v130 = vsel %vm126, %v116, 0.0
    %v131 = vadd.f32 %v129, %v130
    %v132 = vsel %vm126, %v117, 0.0
    %v133 = vadd.f32 %v131, %v132
    %v134 = vsel %vm126, %v118, 0.0
    %v135 = vadd.f32 %v133, %v134
    %v136 = vsel %vm126, %v119, 0.0
    %v137 = vadd.f32 %v135, %v136
    %v138 = vsel %vm126, %v120, 0.0
    %v139 = vadd.f32 %v137, %v138
    %v140 = vsel %vm126, %v121, 0.0
    %v141 = vadd.f32 %v139, %v140
    %v142 = vsel %vm126, %v122, 0.0
    %v143 = vadd.f32 %v141, %v142
    %v144 = vsel %vm126, %v123, 0.0
    %v145 = vadd.f32 %v143, %v144
    %v146 = vsel %vm126, %v124, 0.0
    %v147 = vadd.f32 %v145, %v146
    %v148 = vsel %vm126, %v125, 0.0
    %v149 = vadd.f32 %v147, %v148
    %150 = vadd.xlane.f32.xlu0 %v149
    %v151 = vpop.xlane.xlu0 %150
    %v152 = vrot.slane %v151, 4
    %v153 = vadd.f32 %v151, %v152
    %v154 = vrot.slane %v153, 2
    %v155 = vadd.f32 %v153, %v154
    %v156 = vrot.slane %v155, 1
    %v157 = vadd.f32 %v155, %v156
    %s158 = vtos %v157
    %v159 = vmul.f32 %v62, 0.299
    %v160 = vmul.f32 %v63, 0.299
    %v161 = vmul.f32 %v68, 0.299
    %v162 = vmul.f32 %v69, 0.299
    %v163 = vmul.f32 %v64, 0.587
    %v164 = vmul.f32 %v65, 0.587
    %v165 = vmul.f32 %v70, 0.587
    %v166 = vmul.f32 %v71, 0.587
    %v167 = vadd.f32 %v159, %v163
    %v168 = vadd.f32 %v160, %v164
    %v169 = vadd.f32 %v161, %v165
    %v170 = vadd.f32 %v162, %v166
    %v171 = vmul.f32 %v66, 0.114
    %v172 = vmul.f32 %v67, 0.114
    %v173 = vmul.f32 %v72, 0.114
    %v174 = vmul.f32 %v73, 0.114
    %v175 = vadd.f32 %v167, %v171
    %v176 = vadd.f32 %v168, %v172
    %v177 = vadd.f32 %v169, %v173
    %v178 = vadd.f32 %v170, %v174
    %vm179 = vcmask 1047680
    %180 = vst.msk [vmem:[#allocation2] sm:$0xff] %vm179, 0.0
    %181 = vst.msk [vmem:[#allocation2 + $0x8] sm:$0xff] %vm179, 0.0
    %182 = vst.msk [vmem:[#allocation2 + $0x10] sm:$0xff] %vm179, 0.0
    %183 = vst.msk [vmem:[#allocation2 + $0x18] sm:$0xff] %vm179, 0.0
    %184 = vst.msk [vmem:[#allocation2 + $0x20] sm:$0xff] %vm179, 0.0
    %185 = vst.msk [vmem:[#allocation2 + $0x28] sm:$0xff] %vm179, 0.0
    %186 = vst.msk [vmem:[#allocation3] sm:$0xff] %vm179, 0.0
    %187 = vst.msk [vmem:[#allocation3 + $0x8] sm:$0xff] %vm179, 0.0
    %188 = vst.msk [vmem:[#allocation3 + $0x10] sm:$0xff] %vm179, 0.0
    %189 = vst.msk [vmem:[#allocation3 + $0x18] sm:$0xff] %vm179, 0.0
    %190 = vst.msk [vmem:[#allocation3 + $0x20] sm:$0xff] %vm179, 0.0
    %191 = vst.msk [vmem:[#allocation3 + $0x28] sm:$0xff] %vm179, 0.0
    %192 = vst.msk [vmem:[#allocation2 + $0x10] sm:$0xff] %vm126, 0.0
    %193 = vst.msk [vmem:[#allocation3 + $0x10] sm:$0xff] %vm126, 0.0
    %194 = vst.msk [vmem:[#allocation2] sm:$0xff] %vm126, %v86
    %195 = vst.msk [vmem:[#allocation2 + $0x8] sm:$0xff] %vm126, %v87
    %196 = vst.msk [vmem:[#allocation3] sm:$0xff] %vm126, %v175
    %197 = vst.msk [vmem:[#allocation3 + $0x8] sm:$0xff] %vm126, %v176
    %198 = vst.msk [vmem:[#allocation2 + $0x28] sm:$0xff] %vm126, 0.0
    %199 = vst.msk [vmem:[#allocation3 + $0x28] sm:$0xff] %vm126, 0.0
    %200 = vst.msk [vmem:[#allocation2 + $0x18] sm:$0xff] %vm126, %v88
    %201 = vst.msk [vmem:[#allocation2 + $0x20] sm:$0xff] %vm126, %v89
    %202 = vst.msk [vmem:[#allocation3 + $0x18] sm:$0xff] %vm126, %v177
    %203 = vst.msk [vmem:[#allocation3 + $0x20] sm:$0xff] %vm126, %v178
    %v204 = vld [vmem:[#allocation2] sm:$0xff]
    %v205 = vld [vmem:[#allocation2 + $0x8] sm:$0xff]
    %v206 = vld [vmem:[#allocation2 + $0x10] sm:$0xff]
    %v207 = vld [vmem:[#allocation2 + $0x18] sm:$0xff]
    %v208 = vld [vmem:[#allocation2 + $0x20] sm:$0xff]
    %v209 = vld [vmem:[#allocation2 + $0x28] sm:$0xff]
    %v210 = vld [vmem:[#allocation3] sm:$0xff]
    %v211 = vld [vmem:[#allocation3 + $0x8] sm:$0xff]
    %v212 = vld [vmem:[#allocation3 + $0x10] sm:$0xff]
    %v213 = vld [vmem:[#allocation3 + $0x18] sm:$0xff]
    %v214 = vld [vmem:[#allocation3 + $0x20] sm:$0xff]
    %v215 = vld [vmem:[#allocation3 + $0x28] sm:$0xff]
    %216 = vrot.lane.b32.xlu0 %v204, 1
    %v217 = vpop.permute.xlu0 %216
    %218 = vrot.lane.b32.xlu0 %v205, 1
    %v219 = vpop.permute.xlu0 %218
    %220 = vrot.lane.b32.xlu0 %v206, 1
    %v221 = vpop.permute.xlu0 %220
    %222 = vrot.lane.b32.xlu0 %v207, 1
    %v223 = vpop.permute.xlu0 %222
    %224 = vrot.lane.b32.xlu0 %v208, 1
    %v225 = vpop.permute.xlu0 %224
    %226 = vrot.lane.b32.xlu0 %v209, 1
    %v227 = vpop.permute.xlu0 %226
    %v228 = vsub.f32 %v204, %v217
    %v229 = vsub.f32 %v205, %v219
    %v230 = vsub.f32 %v206, %v221
    %v231 = vsub.f32 %v207, %v223
    %v232 = vsub.f32 %v208, %v225
    %v233 = vsub.f32 %v209, %v227
    %v234 = vand.u32 2147483647, %v228
    %v235 = vand.u32 2147483647, %v229
    %v236 = vand.u32 2147483647, %v230
    %v237 = vand.u32 2147483647, %v231
    %v238 = vand.u32 2147483647, %v232
    %v239 = vand.u32 2147483647, %v233
    %240 = vrot.lane.b32.xlu0 %v210, 1
    %v241 = vpop.permute.xlu0 %240
    %242 = vrot.lane.b32.xlu0 %v211, 1
    %v243 = vpop.permute.xlu0 %242
    %244 = vrot.lane.b32.xlu0 %v212, 1
    %v245 = vpop.permute.xlu0 %244
    %246 = vrot.lane.b32.xlu0 %v213, 1
    %v247 = vpop.permute.xlu0 %246
    %248 = vrot.lane.b32.xlu0 %v214, 1
    %v249 = vpop.permute.xlu0 %248
    %250 = vrot.lane.b32.xlu0 %v215, 1
    %v251 = vpop.permute.xlu0 %250
    %v252 = vsub.f32 %v210, %v241
    %v253 = vsub.f32 %v211, %v243
    %v254 = vsub.f32 %v212, %v245
    %v255 = vsub.f32 %v213, %v247
    %v256 = vsub.f32 %v214, %v249
    %v257 = vsub.f32 %v215, %v251
    %v258 = vand.u32 2147483647, %v252
    %v259 = vand.u32 2147483647, %v253
    %v260 = vand.u32 2147483647, %v254
    %v261 = vand.u32 2147483647, %v255
    %v262 = vand.u32 2147483647, %v256
    %v263 = vand.u32 2147483647, %v257
    %v264 = vrot.slane %v258, 7
    %v265 = vrot.slane %v259, 7
    %v266 = vrot.slane %v260, 7
    %v267 = vrot.slane %v261, 7
    %v268 = vrot.slane %v262, 7
    %v269 = vrot.slane %v263, 7
    %v270 = vlaneseq
    %v271 = vshrl.u32 %v270, 7
    %vm272 = vcmp.lt.s32.totalorder %v271, 1
    %v273 = vsel %vm272, %v268, %v269
    %v274 = vsel %vm272, %v267, %v268
    %v275 = vsel %vm272, %v266, %v267
    %v276 = vsel %vm272, %v265, %v266
    %v277 = vsel %vm272, %v264, %v265
    %v278 = vsel %vm272, %v269, %v264
    %v279 = vadd.f32 %v258, %v278
    %v280 = vadd.f32 %v259, %v277
    %v281 = vadd.f32 %v260, %v276
    %v282 = vadd.f32 %v261, %v275
    %v283 = vadd.f32 %v262, %v274
    %v284 = vadd.f32 %v263, %v273
    %v285 = vrot.slane %v258, 1
    %v286 = vrot.slane %v259, 1
    %v287 = vrot.slane %v260, 1
    %v288 = vrot.slane %v261, 1
    %v289 = vrot.slane %v262, 1
    %v290 = vrot.slane %v263, 1
    %vm291 = vcmp.lt.s32.totalorder %v271, 7
    %v292 = vsel %vm291, %v289, %v290
    %v293 = vsel %vm291, %v288, %v289
    %v294 = vsel %vm291, %v287, %v288
    %v295 = vsel %vm291, %v286, %v287
    %v296 = vsel %vm291, %v285, %v286
    %v297 = vsel %vm291, %v290, %v285
    %v298 = vadd.f32 %v279, %v296
    %v299 = vadd.f32 %v280, %v295
    %v300 = vadd.f32 %v281, %v294
    %v301 = vadd.f32 %v282, %v293
    %v302 = vadd.f32 %v283, %v292
    %v303 = vadd.f32 %v284, %v297
    %304 = vrot.lane.b32.xlu0 %v298, 1
    %v305 = vpop.permute.xlu0 %304
    %306 = vrot.lane.b32.xlu0 %v299, 1
    %v307 = vpop.permute.xlu0 %306
    %308 = vrot.lane.b32.xlu0 %v300, 1
    %v309 = vpop.permute.xlu0 %308
    %310 = vrot.lane.b32.xlu0 %v301, 1
    %v311 = vpop.permute.xlu0 %310
    %312 = vrot.lane.b32.xlu0 %v302, 1
    %v313 = vpop.permute.xlu0 %312
    %314 = vrot.lane.b32.xlu0 %v303, 1
    %v315 = vpop.permute.xlu0 %314
    %v316 = vadd.f32 %v298, %v305
    %v317 = vadd.f32 %v299, %v307
    %v318 = vadd.f32 %v300, %v309
    %v319 = vadd.f32 %v301, %v311
    %v320 = vadd.f32 %v302, %v313
    %v321 = vadd.f32 %v303, %v315
    %322 = vrot.lane.b32.xlu0 %v298, 127
    %v323 = vpop.permute.xlu0 %322
    %324 = vrot.lane.b32.xlu0 %v299, 127
    %v325 = vpop.permute.xlu0 %324
    %326 = vrot.lane.b32.xlu0 %v300, 127
    %v327 = vpop.permute.xlu0 %326
    %328 = vrot.lane.b32.xlu0 %v301, 127
    %v329 = vpop.permute.xlu0 %328
    %330 = vrot.lane.b32.xlu0 %v302, 127
    %v331 = vpop.permute.xlu0 %330
    %332 = vrot.lane.b32.xlu0 %v303, 127
    %v333 = vpop.permute.xlu0 %332
    %v334 = vadd.f32 %v316, %v323
    %v335 = vadd.f32 %v317, %v325
    %v336 = vadd.f32 %v318, %v327
    %v337 = vadd.f32 %v319, %v329
    %v338 = vadd.f32 %v320, %v331
    %v339 = vadd.f32 %v321, %v333
    %v340 = vmul.f32 %v334, -1.1111112
    %v341 = vmul.f32 %v335, -1.1111112
    %v342 = vmul.f32 %v336, -1.1111112
    %v343 = vmul.f32 %v337, -1.1111112
    %v344 = vmul.f32 %v338, -1.1111112
    %v345 = vmul.f32 %v339, -1.1111112
    %v346 = vmul.f32 %v340, 1.442695
    %v347 = vpow.pop %v346
    %v348 = vmul.f32 %v341, 1.442695
    %v349 = vpow.pop %v348
    %v350 = vmul.f32 %v342, 1.442695
    %v351 = vpow.pop %v350
    %v352 = vmul.f32 %v343, 1.442695
    %v353 = vpow.pop %v352
    %v354 = vmul.f32 %v344, 1.442695
    %v355 = vpow.pop %v354
    %v356 = vmul.f32 %v345, 1.442695
    %v357 = vpow.pop %v356
    %v358 = vmul.f32 %v234, %v347
    %v359 = vmul.f32 %v235, %v349
    %v360 = vmul.f32 %v236, %v351
    %v361 = vmul.f32 %v237, %v353
    %v362 = vmul.f32 %v238, %v355
    %v363 = vmul.f32 %v239, %v357
    %v364 = vadd.f32 %v358, %v359
    %v365 = vadd.f32 %v364, %v360
    %v366 = vadd.f32 %v365, %v361
    %v367 = vadd.f32 %v366, %v362
    %v368 = vadd.f32 %v367, %v363
    %369 = vadd.xlane.f32.xlu0 %v368
    %v370 = vpop.xlane.xlu0 %369
    %v371 = vrot.slane %v370, 4
    %v372 = vadd.f32 %v370, %v371
    %v373 = vrot.slane %v372, 2
    %v374 = vadd.f32 %v372, %v373
    %v375 = vrot.slane %v374, 1
    %v376 = vadd.f32 %v374, %v375
    %s377 = vtos %v376
    %v378 = vrot.slane %v204, 7
    %v379 = vrot.slane %v205, 7
    %v380 = vrot.slane %v206, 7
    %v381 = vrot.slane %v207, 7
    %v382 = vrot.slane %v208, 7
    %v383 = vrot.slane %v209, 7
    %v384 = vsel %vm272, %v382, %v383
    %v385 = vsel %vm272, %v381, %v382
    %v386 = vsel %vm272, %v380, %v381
    %v387 = vsel %vm272, %v379, %v380
    %v388 = vsel %vm272, %v378, %v379
    %v389 = vsel %vm272, %v383, %v378
    %v390 = vsub.f32 %v204, %v389
    %v391 = vsub.f32 %v205, %v388
    %v392 = vsub.f32 %v206, %v387
    %v393 = vsub.f32 %v207, %v386
    %v394 = vsub.f32 %v208, %v385
    %v395 = vsub.f32 %v209, %v384
    %v396 = vand.u32 2147483647, %v390
    %v397 = vand.u32 2147483647, %v391
    %v398 = vand.u32 2147483647, %v392
    %v399 = vand.u32 2147483647, %v393
    %v400 = vand.u32 2147483647, %v394
    %v401 = vand.u32 2147483647, %v395
    %v402 = vrot.slane %v210, 7
    %v403 = vrot.slane %v211, 7
    %v404 = vrot.slane %v212, 7
    %v405 = vrot.slane %v213, 7
    %v406 = vrot.slane %v214, 7
    %v407 = vrot.slane %v215, 7
    %v408 = vsel %vm272, %v406, %v407
    %v409 = vsel %vm272, %v405, %v406
    %v410 = vsel %vm272, %v404, %v405
    %v411 = vsel %vm272, %v403, %v404
    %v412 = vsel %vm272, %v402, %v403
    %v413 = vsel %vm272, %v407, %v402
    %v414 = vsub.f32 %v210, %v413
    %v415 = vsub.f32 %v211, %v412
    %v416 = vsub.f32 %v212, %v411
    %v417 = vsub.f32 %v213, %v410
    %v418 = vsub.f32 %v214, %v409
    %v419 = vsub.f32 %v215, %v408
    %v420 = vand.u32 2147483647, %v414
    %v421 = vand.u32 2147483647, %v415
    %v422 = vand.u32 2147483647, %v416
    %v423 = vand.u32 2147483647, %v417
    %v424 = vand.u32 2147483647, %v418
    %v425 = vand.u32 2147483647, %v419
    %v426 = vrot.slane %v420, 7
    %v427 = vrot.slane %v421, 7
    %v428 = vrot.slane %v422, 7
    %v429 = vrot.slane %v423, 7
    %v430 = vrot.slane %v424, 7
    %v431 = vrot.slane %v425, 7
    %v432 = vsel %vm272, %v430, %v431
    %v433 = vsel %vm272, %v429, %v430
    %v434 = vsel %vm272, %v428, %v429
    %v435 = vsel %vm272, %v427, %v428
    %v436 = vsel %vm272, %v426, %v427
    %v437 = vsel %vm272, %v431, %v426
    %v438 = vadd.f32 %v420, %v437
    %v439 = vadd.f32 %v421, %v436
    %v440 = vadd.f32 %v422, %v435
    %v441 = vadd.f32 %v423, %v434
    %v442 = vadd.f32 %v424, %v433
    %v443 = vadd.f32 %v425, %v432
    %v444 = vrot.slane %v420, 1
    %v445 = vrot.slane %v421, 1
    %v446 = vrot.slane %v422, 1
    %v447 = vrot.slane %v423, 1
    %v448 = vrot.slane %v424, 1
    %v449 = vrot.slane %v425, 1
    %v450 = vsel %vm291, %v448, %v449
    %v451 = vsel %vm291, %v447, %v448
    %v452 = vsel %vm291, %v446, %v447
    %v453 = vsel %vm291, %v445, %v446
    %v454 = vsel %vm291, %v444, %v445
    %v455 = vsel %vm291, %v449, %v444
    %v456 = vadd.f32 %v438, %v454
    %v457 = vadd.f32 %v439, %v453
    %v458 = vadd.f32 %v440, %v452
    %v459 = vadd.f32 %v441, %v451
    %v460 = vadd.f32 %v442, %v450
    %v461 = vadd.f32 %v443, %v455
    %462 = vrot.lane.b32.xlu0 %v456, 1
    %v463 = vpop.permute.xlu0 %462
    %464 = vrot.lane.b32.xlu0 %v457, 1
    %v465 = vpop.permute.xlu0 %464
    %466 = vrot.lane.b32.xlu0 %v458, 1
    %v467 = vpop.permute.xlu0 %466
    %468 = vrot.lane.b32.xlu0 %v459, 1
    %v469 = vpop.permute.xlu0 %468
    %470 = vrot.lane.b32.xlu0 %v460, 1
    %v471 = vpop.permute.xlu0 %470
    %472 = vrot.lane.b32.xlu0 %v461, 1
    %v473 = vpop.permute.xlu0 %472
    %v474 = vadd.f32 %v456, %v463
    %v475 = vadd.f32 %v457, %v465
    %v476 = vadd.f32 %v458, %v467
    %v477 = vadd.f32 %v459, %v469
    %v478 = vadd.f32 %v460, %v471
    %v479 = vadd.f32 %v461, %v473
    %480 = vrot.lane.b32.xlu0 %v456, 127
    %v481 = vpop.permute.xlu0 %480
    %482 = vrot.lane.b32.xlu0 %v457, 127
    %v483 = vpop.permute.xlu0 %482
    %484 = vrot.lane.b32.xlu0 %v458, 127
    %v485 = vpop.permute.xlu0 %484
    %486 = vrot.lane.b32.xlu0 %v459, 127
    %v487 = vpop.permute.xlu0 %486
    %488 = vrot.lane.b32.xlu0 %v460, 127
    %v489 = vpop.permute.xlu0 %488
    %490 = vrot.lane.b32.xlu0 %v461, 127
    %v491 = vpop.permute.xlu0 %490
    %v492 = vadd.f32 %v474, %v481
    %v493 = vadd.f32 %v475, %v483
    %v494 = vadd.f32 %v476, %v485
    %v495 = vadd.f32 %v477, %v487
    %v496 = vadd.f32 %v478, %v489
    %v497 = vadd.f32 %v479, %v491
    %v498 = vmul.f32 %v492, -1.1111112
    %v499 = vmul.f32 %v493, -1.1111112
    %v500 = vmul.f32 %v494, -1.1111112
    %v501 = vmul.f32 %v495, -1.1111112
    %v502 = vmul.f32 %v496, -1.1111112
    %v503 = vmul.f32 %v497, -1.1111112
    %v504 = vmul.f32 %v498, 1.442695
    %v505 = vpow.pop %v504
    %v506 = vmul.f32 %v499, 1.442695
    %v507 = vpow.pop %v506
    %v508 = vmul.f32 %v500, 1.442695
    %v509 = vpow.pop %v508
    %v510 = vmul.f32 %v501, 1.442695
    %v511 = vpow.pop %v510
    %v512 = vmul.f32 %v502, 1.442695
    %v513 = vpow.pop %v512
    %v514 = vmul.f32 %v503, 1.442695
    %v515 = vpow.pop %v514
    %v516 = vmul.f32 %v396, %v505
    %v517 = vmul.f32 %v397, %v507
    %v518 = vmul.f32 %v398, %v509
    %v519 = vmul.f32 %v399, %v511
    %v520 = vmul.f32 %v400, %v513
    %v521 = vmul.f32 %v401, %v515
    %v522 = vadd.f32 %v516, %v517
    %v523 = vadd.f32 %v522, %v518
    %v524 = vadd.f32 %v523, %v519
    %v525 = vadd.f32 %v524, %v520
    %v526 = vadd.f32 %v525, %v521
    %527 = vadd.xlane.f32.xlu0 %v526
    %v528 = vpop.xlane.xlu0 %527
    %v529 = vrot.slane %v528, 4
    %v530 = vadd.f32 %v528, %v529
    %v531 = vrot.slane %v530, 2
    %v532 = vadd.f32 %v530, %v531
    %v533 = vrot.slane %v532, 1
    %v534 = vadd.f32 %v532, %v533
    %s535 = vtos %v534
    %s536 = smul.f32 %s158, 0.0006510417
    %s537 = sadd.f32 %s377, %s535
    %s538 = smul.f32 %s537, 0.0051903115
    %s539 = sadd.f32 %s536, %s538
    %s540 = scalar_lea.smem [#allocation10], 0
    %541 = sst [smem:[%s540]] %s539
    // Predicated region
    $region26: #{tpu_custom_call.1} parent=1 // pred_check
      _
    $region27: #{tpu_custom_call.1} parent=1 // pred_check_branch
      %543 = sbr.rel (0) target = $region29
    $region28: #{tpu_custom_call.1} parent=1 // pred_region
      %545 = vsyncadd [#allocation6], 0
      %s547 = sshll.u32 %s3, 4
      %s548 = int_to_ptr.hbm [resolvable:$true] %s547
      %550 = dma.smem_to_hbm [#allocation10], 16, %s548, [#allocation6]
    $region29: #{tpu_custom_call.1} parent=1 // pred_fallthru
      _
    // Predicated region
    $region30: #{tpu_custom_call.1} parent=1 // pred_check
      _
    $region31: #{tpu_custom_call.1} parent=1 // pred_check_branch
      %552 = sbr.rel (0) target = $region33
    $region32: #{tpu_custom_call.1} parent=1 // pred_region
      %554 = dma.done [#allocation6], 16
    $region33: #{tpu_custom_call.1} parent=1 // pred_fallthru
      _
    %555 = sfence
    %556 = vsyncpa [#allocation5], 1
    %557 = vsyncpa [#allocation8], 1
    %558 = vsyncpa [#allocation6], 1

</llo_original>
